<compile_context>
chip_gen: v6e
topology: v6e:2x2x1
jax: 0.10.0
libtpu: 0.0.40
codegen_flags: <defaults>
</compile_context>

<pallas_src>
import numpy as np

import jax
import jax.numpy as jnp
from jax.experimental import pallas as pl
from jax.experimental.pallas import tpu as pltpu


def _detection_kernel(p_ref, mul_ref, add_ref, sel_ref, o_ref):
    """Decode one (Bt, A*attrs, GGp) block of raw conv outputs.

    out = where(is_exp_row, exp(p), sigmoid(p)) * mul + add
      mul: stride on x/y rows, anchor w/h on w/h rows, 1 on conf/class rows
      add: gx*stride / gy*stride on x/y rows, 0 elsewhere
      sel: 1.0 on the w/h (exp) rows, 0.0 elsewhere
    All three planes are constant, VMEM-resident inputs.
    """
    p = p_ref[...].astype(jnp.float32)          # in-register cast (bf16-friendly)
    e = jnp.exp(p)                              # shared by w/h rows AND sigmoid
    # sigmoid via the shared exp: e/(1+e).  Guard p>20: e/(1+e) would become
    # NaN for p>~88 (f32 exp overflow) while the true sigmoid saturates to 1.0.
    # (pl.reciprocal(..., approx=True) is a further v7x-only EUP saving, kept
    #  off here for exactness vs the reference.)
    sig = jnp.where(p > jnp.float32(20.0), jnp.float32(1.0),
                    e * pl.reciprocal(jnp.float32(1.0) + e, approx=False))
    decoded = jnp.where(sel_ref[...] > jnp.float32(0.5), e, sig)
    o_ref[...] = (decoded * mul_ref[...] + add_ref[...]).astype(o_ref.dtype)


def _build_planes(G, gg_pad, attrs, stride, anchors, batch_tile):
    """Host-side constant planes, tiled to the batch-tile block shape."""
    A = len(anchors)
    R = A * attrs
    r = np.arange(R) % attrs                    # attr index within anchor block
    a = np.arange(R) // attrs                   # anchor index
    lane = np.arange(gg_pad)
    gx = (lane % G).astype(np.float32) * float(stride)   # gx varies fastest
    gy = (lane // G).astype(np.float32) * float(stride)  # (garbage past gg: sliced)
    aw = np.asarray([w for (w, _) in anchors], np.float32)
    ah = np.asarray([h for (_, h) in anchors], np.float32)

    # multiplicative plane: stride on rows 0/1, original anchor w/h on rows 2/3
    # (the PyTorch code uses (anchor/stride) then re-multiplies by stride), 1 else.
    mul_rows = np.where(r < 2, np.float32(stride), np.float32(1.0))
    mul_rows = np.where(r == 2, aw[a], mul_rows)
    mul_rows = np.where(r == 3, ah[a], mul_rows)
    mul = np.repeat(mul_rows[:, None], gg_pad, axis=1).astype(np.float32)

    # additive plane: pre-scaled grid offsets on rows 0/1, zero elsewhere
    # ((sigmoid + off) * stride == sigmoid*stride + off*stride).
    add = np.zeros((R, gg_pad), np.float32)
    add[r == 0, :] = gx
    add[r == 1, :] = gy

    # selector plane: 1.0 on exp rows (w/h), 0.0 on sigmoid rows.
    sel_rows = np.where((r == 2) | (r == 3), np.float32(1.0), np.float32(0.0))
    sel = np.repeat(sel_rows[:, None], gg_pad, axis=1).astype(np.float32)

    def tile(x):
        return jnp.asarray(np.tile(x[None], (batch_tile, 1, 1)))

    return tile(mul), tile(add), tile(sel)


def detection_layer(prediction_nchw, inp_dim, anchors, num_classes, *,
                    output_layout="torch", target_block_bytes=1 << 20):
    """JAX/Pallas equivalent of DetectionLayer.forward(..., targets=None).

    prediction_nchw: (B, A*(5+num_classes), G, G) float32 or bfloat16
    output_layout="torch":      (B, G*G*A, 5+num_classes)  (matches PyTorch)
    output_layout="lane_dense": (B, A*(5+num_classes), G*G) (no extra HBM pass)
    """
    B, C, G, G2 = prediction_nchw.shape
    assert G == G2
    A = len(anchors)
    attrs = 5 + num_classes
    assert C == A * attrs
    stride = inp_dim // G
    gg = G * G
    gg_pad = ((gg + 127) // 128) * 128          # lane-dense, unmasked stores
    R = A * attrs
    dtype = prediction_nchw.dtype

    # ---- glue: NCHW -> (B, A*attrs, G*G); no dtype pre-pass ----
    pred = prediction_nchw.reshape(B, R, gg)
    if gg_pad != gg:
        pred = jnp.pad(pred, ((0, 0), (0, 0), (0, gg_pad - gg)))

    # ---- batch tile: largest divisor of B whose block is <= ~target bytes ----
    row_bytes = R * gg_pad * 4
    bt = 1
    for cand in range(1, B + 1):
        if B % cand == 0 and cand * row_bytes <= target_block_bytes:
            bt = cand
    grid = (B // bt,)

    mul_p, add_p, sel_p = _build_planes(
        G, gg_pad, attrs, stride,
        [(float(w), float(h)) for (w, h) in anchors], bt)

    data_spec = pl.BlockSpec((bt, R, gg_pad), lambda i: (i, 0, 0))
    plane_spec = pl.BlockSpec((bt, R, gg_pad), lambda i: (0, 0, 0))  # VMEM-resident

    out = pl.pallas_call(
        _detection_kernel,
        out_shape=jax.ShapeDtypeStruct((B, R, gg_pad), dtype),
        grid=grid,
        in_specs=[data_spec, plane_spec, plane_spec, plane_spec],
        out_specs=data_spec,
        compiler_params=pltpu.CompilerParams(
            dimension_semantics=("parallel",),      # v7x: split batch over TCs
            vmem_limit_bytes=32 * 1024 * 1024),     # v5e: raise 16 MiB default
    )(pred, mul_p, add_p, sel_p)

    if gg_pad != gg:
        out = out[..., :gg]

    if output_layout == "lane_dense":
        return out                                  # (B, A*attrs, G*G)

    # ---- glue: match the PyTorch output ordering (lane-sparse; prefer
    #      output_layout="lane_dense" and fuse this into the consumer) ----
    out = out.reshape(B, A, attrs, gg)
    out = jnp.transpose(out, (0, 3, 1, 2))
    return out.reshape(B, gg * A, attrs)


def detection_layer_reference(prediction_nchw, inp_dim, anchors, num_classes):
    """Pure-JAX reference replicating the PyTorch forward semantics."""
    B, C, G, _ = prediction_nchw.shape
    A = len(anchors)
    attrs = 5 + num_classes
    stride = inp_dim // G
    anchors_s = jnp.asarray(anchors, dtype=jnp.float32) / float(stride)

    p = prediction_nchw.astype(jnp.float32).reshape(B, A, attrs, G, G)
    p = p.transpose(0, 1, 3, 4, 2)
    xo, yo = jnp.meshgrid(jnp.arange(G, dtype=jnp.float32),
                          jnp.arange(G, dtype=jnp.float32))  # xo[i,j]=j, yo[i,j]=i

    bx = jax.nn.sigmoid(p[..., 0]) + xo[None, None]
    by = jax.nn.sigmoid(p[..., 1]) + yo[None, None]
    bw = jnp.exp(p[..., 2]) * anchors_s[:, 0][None, :, None, None]
    bh = jnp.exp(p[..., 3]) * anchors_s[:, 1][None, :, None, None]
    conf = jax.nn.sigmoid(p[..., 4])
    cls = jax.nn.sigmoid(p[..., 5:])

    coords = jnp.stack([bx, by, bw, bh], axis=-1) * float(stride)
    pred = jnp.concatenate([coords, conf[..., None], cls], axis=-1)  # (B,A,G,G,attrs)
    pred = jnp.transpose(pred, (0, 2, 3, 1, 4))
    return pred.reshape(B, G * G * A, attrs)


if __name__ == "__main__":
    # Small, module-consistent shapes:
    #   batch=2, num_anchors=3, num_classes=4 -> channels = 3*(5+4) = 27
    #   grid_size=16, inp_dim=128 -> stride=8
    B, A, num_classes, G = 2, 3, 4, 16
    attrs = 5 + num_classes
    inp_dim = 128
    anchors = [(10.0, 13.0), (16.0, 30.0), (33.0, 23.0)]

    key = jax.random.PRNGKey(0)
    x = jax.random.normal(key, (B, A * attrs, G, G), dtype=jnp.float32)

    out = detection_layer(x, inp_dim, anchors, num_classes)
    out = jax.block_until_ready(out)

    ref = detection_layer_reference(x, inp_dim, anchors, num_classes)
    assert out.shape == (B, G * G * A, attrs), out.shape
    assert jnp.allclose(out, ref, atol=1e-4, rtol=1e-4), "mismatch vs reference"

    print("KERNEL_OK")
</pallas_src>

<mosaic_0001>
module attributes {stable_mosaic.version = 11 : i64} {
  func.func @_detection_kernel(%arg0: i32, %arg1: memref<2x27x256xf32, #tpu.memory_space<vmem>>, %arg2: memref<2x27x256xf32, #tpu.memory_space<vmem>>, %arg3: memref<2x27x256xf32, #tpu.memory_space<vmem>>, %arg4: memref<2x27x256xf32, #tpu.memory_space<vmem>>, %arg5: memref<2x27x256xf32, #tpu.memory_space<vmem>>) attributes {dimension_semantics = [#tpu.dimension_semantics<parallel>], iteration_bounds = array<i64: 1>, scalar_prefetch = 0 : i64, scratch_operands = 0 : i64, tpu.core_type = #tpu.core_type<tc>, window_params = [{transform_indices = @transform_0, window_bounds = array<i64: 2, 27, 256>}, {pipeline_mode = #tpu.pipeline_mode<synchronous>, transform_indices = @transform_1, window_bounds = array<i64: 2, 27, 256>}, {pipeline_mode = #tpu.pipeline_mode<synchronous>, transform_indices = @transform_2, window_bounds = array<i64: 2, 27, 256>}, {pipeline_mode = #tpu.pipeline_mode<synchronous>, transform_indices = @transform_3, window_bounds = array<i64: 2, 27, 256>}, {transform_indices = @transform_4, window_bounds = array<i64: 2, 27, 256>}]} {
    %c0 = arith.constant 0 : index
    %c0_0 = arith.constant 0 : index
    %c0_1 = arith.constant 0 : index
    %0 = vector.load %arg1[%c0, %c0_0, %c0_1] : memref<2x27x256xf32, #tpu.memory_space<vmem>>, vector<2x27x256xf32>
    %1 = math.exp %0 : vector<2x27x256xf32>
    %cst = arith.constant 2.000000e+01 : f32
    %2 = vector.broadcast %cst : f32 to vector<2x27x256xf32>
    %3 = arith.cmpf ogt, %0, %2 : vector<2x27x256xf32>
    %cst_2 = arith.constant 1.000000e+00 : f32
    %4 = vector.broadcast %cst_2 : f32 to vector<2x27x256xf32>
    %5 = arith.addf %4, %1 : vector<2x27x256xf32>
    %6 = tpu.reciprocal %5 : vector<2x27x256xf32> -> vector<2x27x256xf32>
    %7 = arith.mulf %1, %6 : vector<2x27x256xf32>
    %cst_3 = arith.constant 1.000000e+00 : f32
    %8 = vector.broadcast %cst_3 : f32 to vector<2x27x256xf32>
    %9 = arith.select %3, %8, %7 : vector<2x27x256xi1>, vector<2x27x256xf32>
    %c0_4 = arith.constant 0 : index
    %c0_5 = arith.constant 0 : index
    %c0_6 = arith.constant 0 : index
    %10 = vector.load %arg4[%c0_4, %c0_5, %c0_6] : memref<2x27x256xf32, #tpu.memory_space<vmem>>, vector<2x27x256xf32>
    %cst_7 = arith.constant 5.000000e-01 : f32
    %11 = vector.broadcast %cst_7 : f32 to vector<2x27x256xf32>
    %12 = arith.cmpf ogt, %10, %11 : vector<2x27x256xf32>
    %13 = arith.select %12, %1, %9 : vector<2x27x256xi1>, vector<2x27x256xf32>
    %c0_8 = arith.constant 0 : index
    %c0_9 = arith.constant 0 : index
    %c0_10 = arith.constant 0 : index
    %14 = vector.load %arg2[%c0_8, %c0_9, %c0_10] : memref<2x27x256xf32, #tpu.memory_space<vmem>>, vector<2x27x256xf32>
    %15 = arith.mulf %13, %14 : vector<2x27x256xf32>
    %c0_11 = arith.constant 0 : index
    %c0_12 = arith.constant 0 : index
    %c0_13 = arith.constant 0 : index
    %16 = vector.load %arg3[%c0_11, %c0_12, %c0_13] : memref<2x27x256xf32, #tpu.memory_space<vmem>>, vector<2x27x256xf32>
    %17 = arith.addf %15, %16 : vector<2x27x256xf32>
    %c0_14 = arith.constant 0 : index
    %c0_15 = arith.constant 0 : index
    %c0_16 = arith.constant 0 : index
    %18 = vector.load %arg5[%c0_14, %c0_15, %c0_16] : memref<2x27x256xf32, #tpu.memory_space<vmem>>, vector<2x27x256xf32>
    tpu.vector_store %arg5[%c0_14, %c0_15, %c0_16], %17 {strides = array<i32>} : memref<2x27x256xf32, #tpu.memory_space<vmem>>, vector<2x27x256xf32>,
    return
  }
  func.func @transform_0(%arg0: i32) -> (i32, i32, i32) {
    %c0_i32 = arith.constant 0 : i32
    %c0_i32_0 = arith.constant 0 : i32
    %c0_i32_1 = arith.constant 0 : i32
    return %arg0, %c0_i32, %c0_i32_0 : i32, i32, i32
  }
  func.func @transform_1(%arg0: i32) -> (i32, i32, i32) {
    %c0_i32 = arith.constant 0 : i32
    %c0_i32_0 = arith.constant 0 : i32
    %c0_i32_1 = arith.constant 0 : i32
    %c0_i32_2 = arith.constant 0 : i32
    return %c0_i32, %c0_i32_0, %c0_i32_1 : i32, i32, i32
  }
  func.func @transform_2(%arg0: i32) -> (i32, i32, i32) {
    %c0_i32 = arith.constant 0 : i32
    %c0_i32_0 = arith.constant 0 : i32
    %c0_i32_1 = arith.constant 0 : i32
    %c0_i32_2 = arith.constant 0 : i32
    return %c0_i32, %c0_i32_0, %c0_i32_1 : i32, i32, i32
  }
  func.func @transform_3(%arg0: i32) -> (i32, i32, i32) {
    %c0_i32 = arith.constant 0 : i32
    %c0_i32_0 = arith.constant 0 : i32
    %c0_i32_1 = arith.constant 0 : i32
    %c0_i32_2 = arith.constant 0 : i32
    return %c0_i32, %c0_i32_0, %c0_i32_1 : i32, i32, i32
  }
  func.func @transform_4(%arg0: i32) -> (i32, i32, i32) {
    %c0_i32 = arith.constant 0 : i32
    %c0_i32_0 = arith.constant 0 : i32
    %c0_i32_1 = arith.constant 0 : i32
    return %arg0, %c0_i32, %c0_i32_0 : i32, i32, i32
  }
}

</mosaic_0001>

<llo_original>
// kernel: tpu_custom_call.1
$region0: #{tpu_custom_call.1}
  #allocation0 [shape = 'u32[]', space=smem, size = 0x4, offset = 0x4, fixed_abs, tag = 'smem constant byte address 0x4 - core index']
  #allocation1 [shape = 'u32[144,128]{1,0:T(1,128)}', space=vmem, size = 0x12000, scoped, tag = 'internal scratch']
  %s0 = inlined_call_operand.vmem [shape: f32[2,27,256], index: 0, kind: input, shape index: {}]
  %s1 = inlined_call_operand.vmem [shape: f32[2,27,256], index: 1, kind: input, shape index: {}]
  %s2 = inlined_call_operand.vmem [shape: f32[2,27,256], index: 2, kind: input, shape index: {}]
  %s3 = inlined_call_operand.vmem [shape: f32[2,27,256], index: 3, kind: input, shape index: {}]
  %s4 = inlined_call_operand.vmem [shape: f32[2,27,256], index: 4, kind: output, shape index: {}]
  %s5 = sld [smem:[#allocation0]]
  $region26: #{tpu_custom_call.1} parent=0
    _
  %s7 = ssub.s32 1, %s5
  %s8 = scalar_select 0, %s7, %s5
  // Predicated region
  $region2: #{tpu_custom_call.1} parent=0 // pred_check
    _
  $region3: #{tpu_custom_call.1} parent=0 // pred_check_branch
    %10 = sbr.rel (0) target = $region5
  $region4: #{tpu_custom_call.1} parent=0 // pred_region
    _
  $region5: #{tpu_custom_call.1} parent=0 // pred_fallthru
    _
  // Predicated region
  $region6: #{tpu_custom_call.1} parent=0 // pred_check
    _
  $region7: #{tpu_custom_call.1} parent=0 // pred_check_branch
    %12 = sbr.rel (0) target = $region9
  $region8: #{tpu_custom_call.1} parent=0 // pred_region
    _
  $region9: #{tpu_custom_call.1} parent=0 // pred_fallthru
    _
  // Predicated region
  $region10: #{tpu_custom_call.1} parent=0 // pred_check
    _
  $region11: #{tpu_custom_call.1} parent=0 // pred_check_branch
    %14 = sbr.rel (0) target = $region13
  $region12: #{tpu_custom_call.1} parent=0 // pred_region
    _
  $region13: #{tpu_custom_call.1} parent=0 // pred_fallthru
    _
  // Predicated region
  $region14: #{tpu_custom_call.1} parent=0 // pred_check
    _
  $region15: #{tpu_custom_call.1} parent=0 // pred_check_branch
    %16 = sbr.rel (0) target = $region17
  $region16: #{tpu_custom_call.1} parent=0 // pred_region
    _
  $region17: #{tpu_custom_call.1} parent=0 // pred_fallthru
    _
  %v17 = vld [vmem:[%s0] sm:$0xff]
  %v18 = vld [vmem:[%s0 + $0x8] sm:$0xff]
  %v19 = vld [vmem:[%s0 + $0x10] sm:$0xff]
  %v20 = vld [vmem:[%s0 + $0x18] sm:$0xff]
  %v21 = vld [vmem:[%s0 + $0x20] sm:$0xff]
  %v22 = vld [vmem:[%s0 + $0x28] sm:$0xff]
  %v23 = vld [vmem:[%s0 + $0x30] sm:$0x7]
  %v24 = vld [vmem:[%s0 + $0x38] sm:$0x7]
  %v25 = vld [vmem:[%s0 + $0x40] sm:$0xff]
  %v26 = vld [vmem:[%s0 + $0x48] sm:$0xff]
  %v27 = vld [vmem:[%s0 + $0x50] sm:$0xff]
  %v28 = vld [vmem:[%s0 + $0x58] sm:$0xff]
  %v29 = vld [vmem:[%s0 + $0x60] sm:$0xff]
  %v30 = vld [vmem:[%s0 + $0x68] sm:$0xff]
  %v31 = vld [vmem:[%s0 + $0x70] sm:$0x7]
  %v32 = vld [vmem:[%s0 + $0x78] sm:$0x7]
  %v33 = vmul.f32 %v17, 1.442695
  %v34 = vpow.pop %v33
  %v35 = vmul.f32 %v18, 1.442695
  %v36 = vpow.pop %v35
  %v37 = vmul.f32 %v19, 1.442695
  %v38 = vpow.pop %v37
  %v39 = vmul.f32 %v20, 1.442695
  %v40 = vpow.pop %v39
  %v41 = vmul.f32 %v21, 1.442695
  %v42 = vpow.pop %v41
  %v43 = vmul.f32 %v22, 1.442695
  %v44 = vpow.pop %v43
  %v45 = vmul.f32 %v23, 1.442695
  %v46 = vpow.pop %v45
  %v47 = vmul.f32 %v24, 1.442695
  %v48 = vpow.pop %v47
  %v49 = vmul.f32 %v25, 1.442695
  %v50 = vpow.pop %v49
  %v51 = vmul.f32 %v26, 1.442695
  %v52 = vpow.pop %v51
  %v53 = vmul.f32 %v27, 1.442695
  %v54 = vpow.pop %v53
  %v55 = vmul.f32 %v28, 1.442695
  %v56 = vpow.pop %v55
  %v57 = vmul.f32 %v29, 1.442695
  %v58 = vpow.pop %v57
  %v59 = vmul.f32 %v30, 1.442695
  %v60 = vpow.pop %v59
  %v61 = vmul.f32 %v31, 1.442695
  %v62 = vpow.pop %v61
  %v63 = vmul.f32 %v32, 1.442695
  %v64 = vpow.pop %v63
  %vm65 = vcmp.gt.f32.partialorder %v17, 20.0
  %vm66 = vcmp.gt.f32.partialorder %v18, 20.0
  %vm67 = vcmp.gt.f32.partialorder %v19, 20.0
  %vm68 = vcmp.gt.f32.partialorder %v20, 20.0
  %vm69 = vcmp.gt.f32.partialorder %v21, 20.0
  %vm70 = vcmp.gt.f32.partialorder %v22, 20.0
  %vm71 = vcmp.gt.f32.partialorder %v23, 20.0
  %vm72 = vcmp.gt.f32.partialorder %v24, 20.0
  %vm73 = vcmp.gt.f32.partialorder %v25, 20.0
  %vm74 = vcmp.gt.f32.partialorder %v26, 20.0
  %vm75 = vcmp.gt.f32.partialorder %v27, 20.0
  %vm76 = vcmp.gt.f32.partialorder %v28, 20.0
  %vm77 = vcmp.gt.f32.partialorder %v29, 20.0
  %vm78 = vcmp.gt.f32.partialorder %v30, 20.0
  %vm79 = vcmp.gt.f32.partialorder %v31, 20.0
  %vm80 = vcmp.gt.f32.partialorder %v32, 20.0
  %v81 = vadd.f32 %v34, 1.0
  %v82 = vadd.f32 %v36, 1.0
  %v83 = vadd.f32 %v38, 1.0
  %v84 = vadd.f32 %v40, 1.0
  %v85 = vadd.f32 %v42, 1.0
  %v86 = vadd.f32 %v44, 1.0
  %v87 = vadd.f32 %v46, 1.0
  %v88 = vadd.f32 %v48, 1.0
  %v89 = vadd.f32 %v50, 1.0
  %v90 = vadd.f32 %v52, 1.0
  %v91 = vadd.f32 %v54, 1.0
  %v92 = vadd.f32 %v56, 1.0
  %v93 = vadd.f32 %v58, 1.0
  %v94 = vadd.f32 %v60, 1.0
  %v95 = vadd.f32 %v62, 1.0
  %v96 = vadd.f32 %v64, 1.0
  %v97 = vrcp.pop %v81
  %v98 = vrcp.pop %v82
  %v99 = vrcp.pop %v83
  %v100 = vrcp.pop %v84
  %v101 = vrcp.pop %v85
  %v102 = vrcp.pop %v86
  %v103 = vrcp.pop %v87
  %v104 = vrcp.pop %v88
  %v105 = vrcp.pop %v89
  %v106 = vrcp.pop %v90
  %v107 = vrcp.pop %v91
  %v108 = vrcp.pop %v92
  %v109 = vrcp.pop %v93
  %v110 = vrcp.pop %v94
  %v111 = vrcp.pop %v95
  %v112 = vrcp.pop %v96
  %v113 = vmul.f32 %v34, %v97
  %v114 = vmul.f32 %v36, %v98
  %v115 = vmul.f32 %v38, %v99
  %v116 = vmul.f32 %v40, %v100
  %v117 = vmul.f32 %v42, %v101
  %v118 = vmul.f32 %v44, %v102
  %v119 = vmul.f32 %v46, %v103
  %v120 = vmul.f32 %v48, %v104
  %v121 = vmul.f32 %v50, %v105
  %v122 = vmul.f32 %v52, %v106
  %v123 = vmul.f32 %v54, %v107
  %v124 = vmul.f32 %v56, %v108
  %v125 = vmul.f32 %v58, %v109
  %v126 = vmul.f32 %v60, %v110
  %v127 = vmul.f32 %v62, %v111
  %v128 = vmul.f32 %v64, %v112
  %v129 = vsel %vm65, 1.0, %v113
  %v130 = vsel %vm66, 1.0, %v114
  %v131 = vsel %vm67, 1.0, %v115
  %v132 = vsel %vm68, 1.0, %v116
  %v133 = vsel %vm69, 1.0, %v117
  %v134 = vsel %vm70, 1.0, %v118
  %v135 = vsel %vm71, 1.0, %v119
  %v136 = vsel %vm72, 1.0, %v120
  %v137 = vsel %vm73, 1.0, %v121
  %v138 = vsel %vm74, 1.0, %v122
  %v139 = vsel %vm75, 1.0, %v123
  %v140 = vsel %vm76, 1.0, %v124
  %v141 = vsel %vm77, 1.0, %v125
  %v142 = vsel %vm78, 1.0, %v126
  %v143 = vsel %vm79, 1.0, %v127
  %v144 = vsel %vm80, 1.0, %v128
  %v145 = vld [vmem:[%s3] sm:$0xff]
  %v146 = vld [vmem:[%s3 + $0x8] sm:$0xff]
  %v147 = vld [vmem:[%s3 + $0x10] sm:$0xff]
  %v148 = vld [vmem:[%s3 + $0x18] sm:$0xff]
  %v149 = vld [vmem:[%s3 + $0x20] sm:$0xff]
  %v150 = vld [vmem:[%s3 + $0x28] sm:$0xff]
  %v151 = vld [vmem:[%s3 + $0x30] sm:$0x7]
  %v152 = vld [vmem:[%s3 + $0x38] sm:$0x7]
  %v153 = vld [vmem:[%s3 + $0x40] sm:$0xff]
  %v154 = vld [vmem:[%s3 + $0x48] sm:$0xff]
  %v155 = vld [vmem:[%s3 + $0x50] sm:$0xff]
  %v156 = vld [vmem:[%s3 + $0x58] sm:$0xff]
  %v157 = vld [vmem:[%s3 + $0x60] sm:$0xff]
  %v158 = vld [vmem:[%s3 + $0x68] sm:$0xff]
  %v159 = vld [vmem:[%s3 + $0x70] sm:$0x7]
  %v160 = vld [vmem:[%s3 + $0x78] sm:$0x7]
  %vm161 = vcmp.gt.f32.partialorder %v145, 0.5
  %vm162 = vcmp.gt.f32.partialorder %v146, 0.5
  %vm163 = vcmp.gt.f32.partialorder %v147, 0.5
  %vm164 = vcmp.gt.f32.partialorder %v148, 0.5
  %vm165 = vcmp.gt.f32.partialorder %v149, 0.5
  %vm166 = vcmp.gt.f32.partialorder %v150, 0.5
  %vm167 = vcmp.gt.f32.partialorder %v151, 0.5
  %vm168 = vcmp.gt.f32.partialorder %v152, 0.5
  %vm169 = vcmp.gt.f32.partialorder %v153, 0.5
  %vm170 = vcmp.gt.f32.partialorder %v154, 0.5
  %vm171 = vcmp.gt.f32.partialorder %v155, 0.5
  %vm172 = vcmp.gt.f32.partialorder %v156, 0.5
  %vm173 = vcmp.gt.f32.partialorder %v157, 0.5
  %vm174 = vcmp.gt.f32.partialorder %v158, 0.5
  %vm175 = vcmp.gt.f32.partialorder %v159, 0.5
  %vm176 = vcmp.gt.f32.partialorder %v160, 0.5
  %v177 = vsel %vm161, %v34, %v129
  %v178 = vsel %vm162, %v36, %v130
  %v179 = vsel %vm163, %v38, %v131
  %v180 = vsel %vm164, %v40, %v132
  %v181 = vsel %vm165, %v42, %v133
  %v182 = vsel %vm166, %v44, %v134
  %v183 = vsel %vm167, %v46, %v135
  %v184 = vsel %vm168, %v48, %v136
  %v185 = vsel %vm169, %v50, %v137
  %v186 = vsel %vm170, %v52, %v138
  %v187 = vsel %vm171, %v54, %v139
  %v188 = vsel %vm172, %v56, %v140
  %v189 = vsel %vm173, %v58, %v141
  %v190 = vsel %vm174, %v60, %v142
  %v191 = vsel %vm175, %v62, %v143
  %v192 = vsel %vm176, %v64, %v144
  %v193 = vld [vmem:[%s1] sm:$0xff]
  %v194 = vld [vmem:[%s1 + $0x8] sm:$0xff]
  %v195 = vld [vmem:[%s1 + $0x10] sm:$0xff]
  %v196 = vld [vmem:[%s1 + $0x18] sm:$0xff]
  %v197 = vld [vmem:[%s1 + $0x20] sm:$0xff]
  %v198 = vld [vmem:[%s1 + $0x28] sm:$0xff]
  %v199 = vld [vmem:[%s1 + $0x30] sm:$0x7]
  %v200 = vld [vmem:[%s1 + $0x38] sm:$0x7]
  %v201 = vld [vmem:[%s1 + $0x40] sm:$0xff]
  %v202 = vld [vmem:[%s1 + $0x48] sm:$0xff]
  %v203 = vld [vmem:[%s1 + $0x50] sm:$0xff]
  %v204 = vld [vmem:[%s1 + $0x58] sm:$0xff]
  %v205 = vld [vmem:[%s1 + $0x60] sm:$0xff]
  %v206 = vld [vmem:[%s1 + $0x68] sm:$0xff]
  %v207 = vld [vmem:[%s1 + $0x70] sm:$0x7]
  %v208 = vld [vmem:[%s1 + $0x78] sm:$0x7]
  %v209 = vmul.f32 %v177, %v193
  %v210 = vmul.f32 %v178, %v194
  %v211 = vmul.f32 %v179, %v195
  %v212 = vmul.f32 %v180, %v196
  %v213 = vmul.f32 %v181, %v197
  %v214 = vmul.f32 %v182, %v198
  %v215 = vmul.f32 %v183, %v199
  %v216 = vmul.f32 %v184, %v200
  %v217 = vmul.f32 %v185, %v201
  %v218 = vmul.f32 %v186, %v202
  %v219 = vmul.f32 %v187, %v203
  %v220 = vmul.f32 %v188, %v204
  %v221 = vmul.f32 %v189, %v205
  %v222 = vmul.f32 %v190, %v206
  %v223 = vmul.f32 %v191, %v207
  %v224 = vmul.f32 %v192, %v208
  %v225 = vld [vmem:[%s2] sm:$0xff]
  %v226 = vld [vmem:[%s2 + $0x8] sm:$0xff]
  %v227 = vld [vmem:[%s2 + $0x10] sm:$0xff]
  %v228 = vld [vmem:[%s2 + $0x18] sm:$0xff]
  %v229 = vld [vmem:[%s2 + $0x20] sm:$0xff]
  %v230 = vld [vmem:[%s2 + $0x28] sm:$0xff]
  %v231 = vld [vmem:[%s2 + $0x30] sm:$0x7]
  %v232 = vld [vmem:[%s2 + $0x38] sm:$0x7]
  %v233 = vld [vmem:[%s2 + $0x40] sm:$0xff]
  %v234 = vld [vmem:[%s2 + $0x48] sm:$0xff]
  %v235 = vld [vmem:[%s2 + $0x50] sm:$0xff]
  %v236 = vld [vmem:[%s2 + $0x58] sm:$0xff]
  %v237 = vld [vmem:[%s2 + $0x60] sm:$0xff]
  %v238 = vld [vmem:[%s2 + $0x68] sm:$0xff]
  %v239 = vld [vmem:[%s2 + $0x70] sm:$0x7]
  %v240 = vld [vmem:[%s2 + $0x78] sm:$0x7]
  %v241 = vadd.f32 %v209, %v225
  %v242 = vadd.f32 %v210, %v226
  %v243 = vadd.f32 %v211, %v227
  %v244 = vadd.f32 %v212, %v228
  %v245 = vadd.f32 %v213, %v229
  %v246 = vadd.f32 %v214, %v230
  %v247 = vadd.f32 %v215, %v231
  %v248 = vadd.f32 %v216, %v232
  %v249 = vadd.f32 %v217, %v233
  %v250 = vadd.f32 %v218, %v234
  %v251 = vadd.f32 %v219, %v235
  %v252 = vadd.f32 %v220, %v236
  %v253 = vadd.f32 %v221, %v237
  %v254 = vadd.f32 %v222, %v238
  %v255 = vadd.f32 %v223, %v239
  %v256 = vadd.f32 %v224, %v240
  %257 = vst [vmem:[%s4] sm:$0xff] %v241
  %258 = vst [vmem:[%s4 + $0x8] sm:$0xff] %v242
  %259 = vst [vmem:[%s4 + $0x10] sm:$0xff] %v243
  %260 = vst [vmem:[%s4 + $0x18] sm:$0xff] %v244
  %261 = vst [vmem:[%s4 + $0x20] sm:$0xff] %v245
  %262 = vst [vmem:[%s4 + $0x28] sm:$0xff] %v246
  %263 = vst [vmem:[%s4 + $0x30] sm:$0x7] %v247
  %264 = vst [vmem:[%s4 + $0x38] sm:$0x7] %v248
  %265 = vst [vmem:[%s4 + $0x40] sm:$0xff] %v249
  %266 = vst [vmem:[%s4 + $0x48] sm:$0xff] %v250
  %267 = vst [vmem:[%s4 + $0x50] sm:$0xff] %v251
  %268 = vst [vmem:[%s4 + $0x58] sm:$0xff] %v252
  %269 = vst [vmem:[%s4 + $0x60] sm:$0xff] %v253
  %270 = vst [vmem:[%s4 + $0x68] sm:$0xff] %v254
  %271 = vst [vmem:[%s4 + $0x70] sm:$0x7] %v255
  %272 = vst [vmem:[%s4 + $0x78] sm:$0x7] %v256
  // Predicated region
  $region18: #{tpu_custom_call.1} parent=0 // pred_check
    _
  $region19: #{tpu_custom_call.1} parent=0 // pred_check_branch
    %274 = sbr.rel (0) target = $region21
  $region20: #{tpu_custom_call.1} parent=0 // pred_region
    _
  $region21: #{tpu_custom_call.1} parent=0 // pred_fallthru
    _
  // Predicated region
  $region22: #{tpu_custom_call.1} parent=0 // pred_check
    _
  $region23: #{tpu_custom_call.1} parent=0 // pred_check_branch
    %276 = sbr.rel (0) target = $region25
  $region24: #{tpu_custom_call.1} parent=0 // pred_region
    _
  $region25: #{tpu_custom_call.1} parent=0 // pred_fallthru
    _

</llo_original>
